<compile_context>
chip_gen: v5e
topology: v5e:2x2
jax: 0.10.0
libtpu: 0.0.40
codegen_flags: <defaults>
</compile_context>

<pallas_src>
import functools

import jax
import jax.numpy as jnp
from jax import lax
from jax.experimental import pallas as pl
from jax.experimental.pallas import tpu as pltpu


def _downsample_kernel(x_ref, w_ref, b_ref, o_ref, pad_ref, col_ref, *, wo, halo):
    # x_ref  : (1, 4, Cin, S)   4 pool-window taps; channels on sublanes,
    #                           flattened pooled spatial (S = Ho*Wo) on lanes
    # w_ref  : (Cout, 9*Cin)    conv weights, K ordered as [ky*3+kx, ci]
    # b_ref  : (Cout, 1)
    # o_ref  : (1, Cout, S)     transposed output -> reshapes straight to NCHW
    # pad_ref: VMEM (Cin, S + 2*halo) f32   zero-haloed flat pooled map
    # col_ref: VMEM (9*Cin, S) f32          im2col (taps folded into K)
    cin = x_ref.shape[2]
    S = x_ref.shape[3]

    # --- 2x2 max pool, stride 2: max over the 4 pre-split window positions ---
    pooled = jnp.maximum(jnp.maximum(x_ref[0, 0], x_ref[0, 1]),
                         jnp.maximum(x_ref[0, 2], x_ref[0, 3]))      # (Cin, S)
    pooled = pooled.astype(jnp.float32)

    # --- flat zero-haloed map: halo (>= Wo+1) columns absorb the y-boundary --
    pad_ref[:, 0:halo] = jnp.zeros((cin, halo), jnp.float32)
    pad_ref[:, halo + S:halo + S + halo] = jnp.zeros((cin, halo), jnp.float32)
    pad_ref[:, halo:halo + S] = pooled

    # --- x-boundary masks (flat layout wraps columns across rows) ------------
    col = lax.broadcasted_iota(jnp.int32, (1, S), 1) % wo
    mask_l = (col > 0).astype(jnp.float32)       # valid when reading x-1
    mask_r = (col < wo - 1).astype(jnp.float32)  # valid when reading x+1

    # --- im2col: fold the 9 taps into the contraction dimension --------------
    # Tap (dy,dx) lives at flat lane offset dy*Wo + dx in the haloed map; the
    # y-boundary is covered by the zero halo, the x-boundary wrap by masks.
    for k in range(9):
        ky, kx = divmod(k, 3)
        dy, dx = ky - 1, kx - 1
        start = halo + dy * wo + dx                  # static lane offset
        v = pad_ref[:, start:start + S]              # (Cin, S) contiguous read
        if dx == -1:
            v = v * mask_l
        elif dx == 1:
            v = v * mask_r
        col_ref[k * cin:(k + 1) * cin, :] = v

    # --- single MXU matmul, K = 9*Cin; result stays in vregs, add bias -------
    out = jnp.dot(w_ref[...], col_ref[...], preferred_element_type=jnp.float32)
    o_ref[0] = (out + b_ref[...]).astype(o_ref.dtype)


@jax.jit
def downsample(x_nchw, weight, bias):
    """MaxPool2d(2,2) followed by Conv2d(Cin, Cout, 3, padding=1).

    x_nchw: (N, Cin, H, W) float32
    weight: (Cout, Cin, 3, 3) float32 (PyTorch OIHW)
    bias  : (Cout,) float32
    returns (N, Cout, H//2, W//2) float32
    """
    N, Cin, H, W = x_nchw.shape
    Cout = weight.shape[0]
    assert H % 2 == 0 and W % 2 == 0
    Ho, Wo = H // 2, W // 2
    S = Ho * Wo
    halo = Wo + 1   # >= Wo + 1 so the dy=+-1, dx=+-1 taps land in the halo

    # (N, Cin, H, W) -> (N, 4, Cin, S): pool window on a leading axis, channels
    # on sublanes, flattened pooled spatial on lanes.  No channel padding.
    x_split = x_nchw.reshape(N, Cin, Ho, 2, Wo, 2)
    x_split = jnp.transpose(x_split, (0, 3, 5, 1, 2, 4))     # (N,2,2,Cin,Ho,Wo)
    x_split = x_split.reshape(N, 4, Cin, S)

    # OIHW -> (Cout, 9*Cin) with K ordered as [ky*3+kx, ci] to match im2col.
    w_flat = jnp.transpose(weight, (0, 2, 3, 1)).reshape(Cout, 9 * Cin)
    b2 = bias.reshape(Cout, 1)

    kernel = functools.partial(_downsample_kernel, wo=Wo, halo=halo)

    out = pl.pallas_call(
        kernel,
        out_shape=jax.ShapeDtypeStruct((N, Cout, S), x_nchw.dtype),
        grid_spec=pltpu.PrefetchScalarGridSpec(
            num_scalar_prefetch=0,
            grid=(N,),
            in_specs=[
                pl.BlockSpec((1, 4, Cin, S), lambda n: (n, 0, 0, 0)),
                pl.BlockSpec((Cout, 9 * Cin), lambda n: (0, 0)),
                pl.BlockSpec((Cout, 1), lambda n: (0, 0)),
            ],
            out_specs=pl.BlockSpec((1, Cout, S), lambda n: (n, 0, 0)),
            scratch_shapes=[
                pltpu.VMEM((Cin, S + 2 * halo), jnp.float32),   # haloed map
                pltpu.VMEM((9 * Cin, S), jnp.float32),          # im2col
            ],
        ),
        compiler_params=pltpu.CompilerParams(
            dimension_semantics=("parallel",)),
    )(x_split, w_flat, b2)

    # (N, Cout, S) is already channel-major: a reshape gives NCHW directly.
    return out.reshape(N, Cout, Ho, Wo)


def _reference(x_nchw, weight, bias):
    pooled = lax.reduce_window(x_nchw, -jnp.inf, lax.max,
                               (1, 1, 2, 2), (1, 1, 2, 2), "VALID")
    out = lax.conv_general_dilated(
        pooled, weight, window_strides=(1, 1), padding=((1, 1), (1, 1)),
        dimension_numbers=("NCHW", "OIHW", "NCHW"),
        precision=lax.Precision.HIGHEST)
    return out + bias.reshape(1, -1, 1, 1)


if __name__ == "__main__":
    N, Cin, Cout, H, W = 2, 4, 8, 16, 16

    key = jax.random.PRNGKey(0)
    kx, kw, kb = jax.random.split(key, 3)
    x = jax.random.normal(kx, (N, Cin, H, W), dtype=jnp.float32)
    weight = jax.random.normal(kw, (Cout, Cin, 3, 3), dtype=jnp.float32) * 0.1
    bias = jax.random.normal(kb, (Cout,), dtype=jnp.float32) * 0.1

    out = downsample(x, weight, bias)
    out = jax.block_until_ready(out)

    ref = _reference(x, weight, bias)
    assert out.shape == (N, Cout, H // 2, W // 2), out.shape
    assert jnp.allclose(out, ref, rtol=1e-3, atol=1e-3), \
        float(jnp.max(jnp.abs(out - ref)))

    print("KERNEL_OK")
</pallas_src>

<mosaic_0001>
module attributes {stable_mosaic.version = 11 : i64} {
  func.func @_downsample_kernel(%arg0: i32, %arg1: memref<1x4x4x64xf32, #tpu.memory_space<vmem>>, %arg2: memref<8x36xf32, #tpu.memory_space<vmem>>, %arg3: memref<8x1xf32, #tpu.memory_space<vmem>>, %arg4: memref<1x8x64xf32, #tpu.memory_space<vmem>>, %arg5: memref<4x82xf32, #tpu.memory_space<vmem>>, %arg6: memref<36x64xf32, #tpu.memory_space<vmem>>) attributes {dimension_semantics = [#tpu.dimension_semantics<parallel>], iteration_bounds = array<i64: 2>, scalar_prefetch = 0 : i64, scratch_operands = 2 : i64, tpu.core_type = #tpu.core_type<tc>, window_params = [{transform_indices = @transform_0, window_bounds = array<i64: 1, 4, 4, 64>}, {pipeline_mode = #tpu.pipeline_mode<synchronous>, transform_indices = @transform_1, window_bounds = array<i64: 8, 36>}, {pipeline_mode = #tpu.pipeline_mode<synchronous>, transform_indices = @transform_2, window_bounds = array<i64: 8, 1>}, {transform_indices = @transform_3, window_bounds = array<i64: 1, 8, 64>}]} {
    %c0 = arith.constant 0 : index
    %c0_0 = arith.constant 0 : index
    %c0_1 = arith.constant 0 : index
    %c0_2 = arith.constant 0 : index
    %0 = vector.load %arg1[%c0, %c0_0, %c0_1, %c0_2] : memref<1x4x4x64xf32, #tpu.memory_space<vmem>>, vector<1x1x4x64xf32>
    %1 = vector.shape_cast %0 : vector<1x1x4x64xf32> to vector<4x64xf32>
    %c0_3 = arith.constant 0 : index
    %c1 = arith.constant 1 : index
    %c0_4 = arith.constant 0 : index
    %c0_5 = arith.constant 0 : index
    %2 = vector.load %arg1[%c0_3, %c1, %c0_4, %c0_5] : memref<1x4x4x64xf32, #tpu.memory_space<vmem>>, vector<1x1x4x64xf32>
    %3 = vector.shape_cast %2 : vector<1x1x4x64xf32> to vector<4x64xf32>
    %4 = arith.maximumf %1, %3 : vector<4x64xf32>
    %c0_6 = arith.constant 0 : index
    %c2 = arith.constant 2 : index
    %c0_7 = arith.constant 0 : index
    %c0_8 = arith.constant 0 : index
    %5 = vector.load %arg1[%c0_6, %c2, %c0_7, %c0_8] : memref<1x4x4x64xf32, #tpu.memory_space<vmem>>, vector<1x1x4x64xf32>
    %6 = vector.shape_cast %5 : vector<1x1x4x64xf32> to vector<4x64xf32>
    %c0_9 = arith.constant 0 : index
    %c3 = arith.constant 3 : index
    %c0_10 = arith.constant 0 : index
    %c0_11 = arith.constant 0 : index
    %7 = vector.load %arg1[%c0_9, %c3, %c0_10, %c0_11] : memref<1x4x4x64xf32, #tpu.memory_space<vmem>>, vector<1x1x4x64xf32>
    %8 = vector.shape_cast %7 : vector<1x1x4x64xf32> to vector<4x64xf32>
    %9 = arith.maximumf %6, %8 : vector<4x64xf32>
    %10 = arith.maximumf %4, %9 : vector<4x64xf32>
    %cst = arith.constant 0.000000e+00 : f32
    %11 = vector.broadcast %cst : f32 to vector<4x9xf32>
    %c0_12 = arith.constant 0 : index
    %c0_13 = arith.constant 0 : index
    %12 = vector.load %arg5[%c0_12, %c0_13] : memref<4x82xf32, #tpu.memory_space<vmem>>, vector<4x9xf32>
    tpu.vector_store %arg5[%c0_12, %c0_13], %11 {strides = array<i32>} : memref<4x82xf32, #tpu.memory_space<vmem>>, vector<4x9xf32>,
    %cst_14 = arith.constant 0.000000e+00 : f32
    %13 = vector.broadcast %cst_14 : f32 to vector<4x9xf32>
    %c0_15 = arith.constant 0 : index
    %c73 = arith.constant 73 : index
    %14 = vector.load %arg5[%c0_15, %c73] : memref<4x82xf32, #tpu.memory_space<vmem>>, vector<4x9xf32>
    tpu.vector_store %arg5[%c0_15, %c73], %13 {strides = array<i32>} : memref<4x82xf32, #tpu.memory_space<vmem>>, vector<4x9xf32>,
    %c0_16 = arith.constant 0 : index
    %c9 = arith.constant 9 : index
    %15 = vector.load %arg5[%c0_16, %c9] : memref<4x82xf32, #tpu.memory_space<vmem>>, vector<4x64xf32>
    tpu.vector_store %arg5[%c0_16, %c9], %10 {strides = array<i32>} : memref<4x82xf32, #tpu.memory_space<vmem>>, vector<4x64xf32>,
    %16 = tpu.iota {dimensions = array<i32: 1>} : vector<1x64xi32>
    %c8_i32 = arith.constant 8 : i32
    %c0_i32 = arith.constant 0 : i32
    %17 = arith.cmpi eq, %c8_i32, %c0_i32 : i32
    %c1_i32 = arith.constant 1 : i32
    %18 = arith.select %17, %c1_i32, %c8_i32 : i32
    %19 = vector.broadcast %18 : i32 to vector<1x64xi32>
    %20 = arith.remsi %16, %19 : vector<1x64xi32>
    %c0_i32_17 = arith.constant 0 : i32
    %21 = vector.broadcast %c0_i32_17 : i32 to vector<1x64xi32>
    %22 = arith.cmpi ne, %20, %21 : vector<1x64xi32>
    %c0_i32_18 = arith.constant 0 : i32
    %23 = vector.broadcast %c0_i32_18 : i32 to vector<1x64xi32>
    %24 = arith.cmpi slt, %20, %23 : vector<1x64xi32>
    %c0_i32_19 = arith.constant 0 : i32
    %25 = arith.cmpi slt, %18, %c0_i32_19 : i32
    %26 = vector.broadcast %25 : i1 to vector<1x64xi1>
    %27 = vector.broadcast %26 : vector<1x64xi1> to vector<1x64xi1>
    %28 = arith.xori %24, %27 : vector<1x64xi1>
    %29 = arith.andi %28, %22 : vector<1x64xi1>
    %30 = vector.broadcast %18 : i32 to vector<1x64xi32>
    %31 = arith.addi %20, %30 : vector<1x64xi32>
    %32 = arith.select %29, %31, %20 : vector<1x64xi1>, vector<1x64xi32>
    %c0_i32_20 = arith.constant 0 : i32
    %33 = vector.broadcast %c0_i32_20 : i32 to vector<1x64xi32>
    %34 = arith.cmpi sgt, %32, %33 : vector<1x64xi32>
    %35 = arith.extui %34 : vector<1x64xi1> to vector<1x64xi32>
    %36 = arith.sitofp %35 : vector<1x64xi32> to vector<1x64xf32>
    %c7_i32 = arith.constant 7 : i32
    %37 = vector.broadcast %c7_i32 : i32 to vector<1x64xi32>
    %38 = arith.cmpi slt, %32, %37 : vector<1x64xi32>
    %39 = arith.extui %38 : vector<1x64xi1> to vector<1x64xi32>
    %40 = arith.sitofp %39 : vector<1x64xi32> to vector<1x64xf32>
    %c0_21 = arith.constant 0 : index
    %c0_22 = arith.constant 0 : index
    %41 = vector.load %arg5[%c0_21, %c0_22] : memref<4x82xf32, #tpu.memory_space<vmem>>, vector<4x64xf32>
    %42 = vector.broadcast %36 : vector<1x64xf32> to vector<4x64xf32>
    %43 = arith.mulf %41, %42 : vector<4x64xf32>
    %c0_23 = arith.constant 0 : index
    %c0_24 = arith.constant 0 : index
    %44 = vector.load %arg6[%c0_23, %c0_24] : memref<36x64xf32, #tpu.memory_space<vmem>>, vector<4x64xf32>
    tpu.vector_store %arg6[%c0_23, %c0_24], %43 {strides = array<i32>} : memref<36x64xf32, #tpu.memory_space<vmem>>, vector<4x64xf32>,
    %c0_25 = arith.constant 0 : index
    %c1_26 = arith.constant 1 : index
    %45 = vector.load %arg5[%c0_25, %c1_26] : memref<4x82xf32, #tpu.memory_space<vmem>>, vector<4x64xf32>
    %c4 = arith.constant 4 : index
    %c0_27 = arith.constant 0 : index
    %46 = vector.load %arg6[%c4, %c0_27] : memref<36x64xf32, #tpu.memory_space<vmem>>, vector<4x64xf32>
    tpu.vector_store %arg6[%c4, %c0_27], %45 {strides = array<i32>} : memref<36x64xf32, #tpu.memory_space<vmem>>, vector<4x64xf32>,
    %c0_28 = arith.constant 0 : index
    %c2_29 = arith.constant 2 : index
    %47 = vector.load %arg5[%c0_28, %c2_29] : memref<4x82xf32, #tpu.memory_space<vmem>>, vector<4x64xf32>
    %48 = vector.broadcast %40 : vector<1x64xf32> to vector<4x64xf32>
    %49 = arith.mulf %47, %48 : vector<4x64xf32>
    %c8 = arith.constant 8 : index
    %c0_30 = arith.constant 0 : index
    %50 = vector.load %arg6[%c8, %c0_30] : memref<36x64xf32, #tpu.memory_space<vmem>>, vector<4x64xf32>
    tpu.vector_store %arg6[%c8, %c0_30], %49 {strides = array<i32>} : memref<36x64xf32, #tpu.memory_space<vmem>>, vector<4x64xf32>,
    %c0_31 = arith.constant 0 : index
    %c8_32 = arith.constant 8 : index
    %51 = vector.load %arg5[%c0_31, %c8_32] : memref<4x82xf32, #tpu.memory_space<vmem>>, vector<4x64xf32>
    %52 = vector.broadcast %36 : vector<1x64xf32> to vector<4x64xf32>
    %53 = arith.mulf %51, %52 : vector<4x64xf32>
    %c12 = arith.constant 12 : index
    %c0_33 = arith.constant 0 : index
    %54 = vector.load %arg6[%c12, %c0_33] : memref<36x64xf32, #tpu.memory_space<vmem>>, vector<4x64xf32>
    tpu.vector_store %arg6[%c12, %c0_33], %53 {strides = array<i32>} : memref<36x64xf32, #tpu.memory_space<vmem>>, vector<4x64xf32>,
    %c0_34 = arith.constant 0 : index
    %c9_35 = arith.constant 9 : index
    %55 = vector.load %arg5[%c0_34, %c9_35] : memref<4x82xf32, #tpu.memory_space<vmem>>, vector<4x64xf32>
    %c16 = arith.constant 16 : index
    %c0_36 = arith.constant 0 : index
    %56 = vector.load %arg6[%c16, %c0_36] : memref<36x64xf32, #tpu.memory_space<vmem>>, vector<4x64xf32>
    tpu.vector_store %arg6[%c16, %c0_36], %55 {strides = array<i32>} : memref<36x64xf32, #tpu.memory_space<vmem>>, vector<4x64xf32>,
    %c0_37 = arith.constant 0 : index
    %c10 = arith.constant 10 : index
    %57 = vector.load %arg5[%c0_37, %c10] : memref<4x82xf32, #tpu.memory_space<vmem>>, vector<4x64xf32>
    %58 = vector.broadcast %40 : vector<1x64xf32> to vector<4x64xf32>
    %59 = arith.mulf %57, %58 : vector<4x64xf32>
    %c20 = arith.constant 20 : index
    %c0_38 = arith.constant 0 : index
    %60 = vector.load %arg6[%c20, %c0_38] : memref<36x64xf32, #tpu.memory_space<vmem>>, vector<4x64xf32>
    tpu.vector_store %arg6[%c20, %c0_38], %59 {strides = array<i32>} : memref<36x64xf32, #tpu.memory_space<vmem>>, vector<4x64xf32>,
    %c0_39 = arith.constant 0 : index
    %c16_40 = arith.constant 16 : index
    %61 = vector.load %arg5[%c0_39, %c16_40] : memref<4x82xf32, #tpu.memory_space<vmem>>, vector<4x64xf32>
    %62 = vector.broadcast %36 : vector<1x64xf32> to vector<4x64xf32>
    %63 = arith.mulf %61, %62 : vector<4x64xf32>
    %c24 = arith.constant 24 : index
    %c0_41 = arith.constant 0 : index
    %64 = vector.load %arg6[%c24, %c0_41] : memref<36x64xf32, #tpu.memory_space<vmem>>, vector<4x64xf32>
    tpu.vector_store %arg6[%c24, %c0_41], %63 {strides = array<i32>} : memref<36x64xf32, #tpu.memory_space<vmem>>, vector<4x64xf32>,
    %c0_42 = arith.constant 0 : index
    %c17 = arith.constant 17 : index
    %65 = vector.load %arg5[%c0_42, %c17] : memref<4x82xf32, #tpu.memory_space<vmem>>, vector<4x64xf32>
    %c28 = arith.constant 28 : index
    %c0_43 = arith.constant 0 : index
    %66 = vector.load %arg6[%c28, %c0_43] : memref<36x64xf32, #tpu.memory_space<vmem>>, vector<4x64xf32>
    tpu.vector_store %arg6[%c28, %c0_43], %65 {strides = array<i32>} : memref<36x64xf32, #tpu.memory_space<vmem>>, vector<4x64xf32>,
    %c0_44 = arith.constant 0 : index
    %c18 = arith.constant 18 : index
    %67 = vector.load %arg5[%c0_44, %c18] : memref<4x82xf32, #tpu.memory_space<vmem>>, vector<4x64xf32>
    %68 = vector.broadcast %40 : vector<1x64xf32> to vector<4x64xf32>
    %69 = arith.mulf %67, %68 : vector<4x64xf32>
    %c32 = arith.constant 32 : index
    %c0_45 = arith.constant 0 : index
    %70 = vector.load %arg6[%c32, %c0_45] : memref<36x64xf32, #tpu.memory_space<vmem>>, vector<4x64xf32>
    tpu.vector_store %arg6[%c32, %c0_45], %69 {strides = array<i32>} : memref<36x64xf32, #tpu.memory_space<vmem>>, vector<4x64xf32>,
    %c0_46 = arith.constant 0 : index
    %c0_47 = arith.constant 0 : index
    %71 = vector.load %arg2[%c0_46, %c0_47] : memref<8x36xf32, #tpu.memory_space<vmem>>, vector<8x36xf32>
    %c0_48 = arith.constant 0 : index
    %c0_49 = arith.constant 0 : index
    %72 = vector.load %arg6[%c0_48, %c0_49] : memref<36x64xf32, #tpu.memory_space<vmem>>, vector<36x64xf32>
    %cst_50 = arith.constant dense<0.000000e+00> : vector<8x64xf32>
    %73 = tpu.matmul %71, %72, %cst_50 {dimension_numbers = #tpu.dot_dimension_numbers<[1], [0], [0], [1], [0, 0, 1, 1], [], []>} : vector<8x36xf32>, vector<36x64xf32>, vector<8x64xf32> -> vector<8x64xf32>
    %c0_51 = arith.constant 0 : index
    %c0_52 = arith.constant 0 : index
    %74 = vector.load %arg3[%c0_51, %c0_52] : memref<8x1xf32, #tpu.memory_space<vmem>>, vector<8x1xf32>
    %75 = vector.broadcast %74 : vector<8x1xf32> to vector<8x64xf32>
    %76 = arith.addf %73, %75 : vector<8x64xf32>
    %c0_53 = arith.constant 0 : index
    %c0_54 = arith.constant 0 : index
    %c0_55 = arith.constant 0 : index
    %77 = vector.load %arg4[%c0_53, %c0_54, %c0_55] : memref<1x8x64xf32, #tpu.memory_space<vmem>>, vector<1x8x64xf32>
    %78 = vector.shape_cast %77 : vector<1x8x64xf32> to vector<8x64xf32>
    %79 = vector.shape_cast %76 : vector<8x64xf32> to vector<1x8x64xf32>
    tpu.vector_store %arg4[%c0_53, %c0_54, %c0_55], %79 {strides = array<i32>} : memref<1x8x64xf32, #tpu.memory_space<vmem>>, vector<1x8x64xf32>,
    return
  }
  func.func @transform_0(%arg0: i32) -> (i32, i32, i32, i32) {
    %c0_i32 = arith.constant 0 : i32
    %c0_i32_0 = arith.constant 0 : i32
    %c0_i32_1 = arith.constant 0 : i32
    %c0_i32_2 = arith.constant 0 : i32
    return %arg0, %c0_i32, %c0_i32_0, %c0_i32_1 : i32, i32, i32, i32
  }
  func.func @transform_1(%arg0: i32) -> (i32, i32) {
    %c0_i32 = arith.constant 0 : i32
    %c0_i32_0 = arith.constant 0 : i32
    %c0_i32_1 = arith.constant 0 : i32
    return %c0_i32, %c0_i32_0 : i32, i32
  }
  func.func @transform_2(%arg0: i32) -> (i32, i32) {
    %c0_i32 = arith.constant 0 : i32
    %c0_i32_0 = arith.constant 0 : i32
    %c0_i32_1 = arith.constant 0 : i32
    return %c0_i32, %c0_i32_0 : i32, i32
  }
  func.func @transform_3(%arg0: i32) -> (i32, i32, i32) {
    %c0_i32 = arith.constant 0 : i32
    %c0_i32_0 = arith.constant 0 : i32
    %c0_i32_1 = arith.constant 0 : i32
    return %arg0, %c0_i32, %c0_i32_0 : i32, i32, i32
  }
}

</mosaic_0001>

<llo_original>
// kernel: downsample.1
$region0: #{downsample.1}
  #allocation0 [shape = 'u32[]', space=smem, size = 0x4, offset = 0x4, fixed_abs, tag = 'smem constant byte address 0x4 - core index']
  #allocation1 [shape = 'u32[72,128]{1,0:T(1,128)}', space=vmem, size = 0x9000, scoped, tag = 'internal scratch']
  #allocation2 [shape = 'f32[4,82]{1,0:T(4,128)}', space=vmem, size = 0x800, scoped, tag = 'scratch operand']
  #allocation3 [shape = 'f32[36,64]{1,0:T(8,128)}', space=vmem, size = 0x5000, scoped, tag = 'scratch operand']
  %s0 = inlined_call_operand.vmem [shape: f32[2,4,4,64], index: 0, kind: input, shape index: {}]
  %s1 = inlined_call_operand.vmem [shape: f32[8,36], index: 1, kind: input, shape index: {}]
  %s2 = inlined_call_operand.vmem [shape: f32[8,1], index: 2, kind: input, shape index: {}]
  %s3 = inlined_call_operand.vmem [shape: f32[2,8,64], index: 3, kind: output, shape index: {}]
  %s4 = sld [smem:[#allocation0]]
  $region45: #{downsample.1} parent=0
    _
  %s6 = ssub.s32 1, %s4
  %s7 = scalar_select 0, %s6, %s4
  loop: start=0, step=1, limit=4
  $region2: #{downsample.1} parent=0 // loop_pre_header
    _
  $region3: #{downsample.1} parent=0 // loop_header
    %s9 = sphi 0, %s13
    %p10 = scmp.ge.s32.totalorder %s9, 4
    %s19 = sphi 0, %s21
    %s22 = sphi 0, %s19
    %s23 = sphi 0, %s22
    %s39 = sphi 0, %s23
    %s43 = sphi 0, %s43
    %s45 = sphi 0, %s43
    %s46 = sphi 0, %s45
    %s60 = sphi 0, %s46
    %s64 = sphi 0, %s64
    %s66 = sphi 0, %s64
    %s67 = sphi 0, %s66
    %s81 = sphi 0, %s67
    %s87 = sphi 0, %s89
    %s90 = sphi 0, %s87
    %s91 = sphi 0, %s90
    %s107 = sphi 0, %s91
  $region4: #{downsample.1} parent=0 // loop_header_branch
    %12 = sbr.rel (%p10) target = $region8
  $region5: #{downsample.1} parent=0 // loop_body
    %s14 = ssub.s32 %s9, 1
    %s15 = ssub.s32 %s9, 2
    %s16 = sadd.s32 %s9, 1
    %s17 = ssub.s32 %s9, %s16
    %p18 = scmp.eq.s32.totalorder %s17, 0
    %s20 = sadd.s32 %s19, 1
    %s21 = scalar_select %p18, %s19, %s20
    %p24 = pneg %p18
    %p25 = scmp.eq.s32.totalorder %s9, 1
    %p26 = por %p24, %p25
    %p27 = scmp.ne.s32.totalorder %s19, %s22
    %p28 = scmp.eq.s32.totalorder %s9, 0
    %p29 = por %p27, %p28
    %p30 = scmp.ne.s32.totalorder %s19, %s22
    %p31 = scmp.eq.s32.totalorder %s14, 1
    %p32 = por %p30, %p31
    %p33 = scmp.ne.s32.totalorder %s22, %s23
    %p34 = scmp.eq.s32.totalorder %s14, 0
    %p35 = por %p33, %p34
    %p36 = scmp.ne.s32.totalorder %s22, %s23
    %p37 = scmp.eq.s32.totalorder %s15, 1
    %p38 = por %p36, %p37
    %p40 = scmp.ne.s32.totalorder %s23, %s39
    %p41 = scmp.eq.s32.totalorder %s15, 0
    %p42 = por %p40, %p41
    %s44 = sadd.s32 %s43, 1
    %p47 = scmp.eq.s32.totalorder %s9, 1
    %p48 = scmp.ne.s32.totalorder %s43, %s45
    %p49 = scmp.eq.s32.totalorder %s9, 0
    %p50 = por %p48, %p49
    %p51 = scmp.ne.s32.totalorder %s43, %s45
    %p52 = scmp.eq.s32.totalorder %s14, 1
    %p53 = por %p51, %p52
    %p54 = scmp.ne.s32.totalorder %s45, %s46
    %p55 = scmp.eq.s32.totalorder %s14, 0
    %p56 = por %p54, %p55
    %p57 = scmp.ne.s32.totalorder %s45, %s46
    %p58 = scmp.eq.s32.totalorder %s15, 1
    %p59 = por %p57, %p58
    %p61 = scmp.ne.s32.totalorder %s46, %s60
    %p62 = scmp.eq.s32.totalorder %s15, 0
    %p63 = por %p61, %p62
    %s65 = sadd.s32 %s64, 1
    %p68 = scmp.eq.s32.totalorder %s9, 1
    %p69 = scmp.ne.s32.totalorder %s64, %s66
    %p70 = scmp.eq.s32.totalorder %s9, 0
    %p71 = por %p69, %p70
    %p72 = scmp.ne.s32.totalorder %s64, %s66
    %p73 = scmp.eq.s32.totalorder %s14, 1
    %p74 = por %p72, %p73
    %p75 = scmp.ne.s32.totalorder %s66, %s67
    %p76 = scmp.eq.s32.totalorder %s14, 0
    %p77 = por %p75, %p76
    %p78 = scmp.ne.s32.totalorder %s66, %s67
    %p79 = scmp.eq.s32.totalorder %s15, 1
    %p80 = por %p78, %p79
    %p82 = scmp.ne.s32.totalorder %s67, %s81
    %p83 = scmp.eq.s32.totalorder %s15, 0
    %p84 = por %p82, %p83
    %s85 = ssub.s32 %s9, %s16
    %p86 = scmp.eq.s32.totalorder %s85, 0
    %s88 = sadd.s32 %s87, 1
    %s89 = scalar_select %p86, %s87, %s88
    %p92 = pneg %p86
    %p93 = scmp.eq.s32.totalorder %s9, 1
    %p94 = por %p92, %p93
    %p95 = scmp.ne.s32.totalorder %s87, %s90
    %p96 = scmp.eq.s32.totalorder %s9, 0
    %p97 = por %p95, %p96
    %p98 = scmp.ne.s32.totalorder %s87, %s90
    %p99 = scmp.eq.s32.totalorder %s14, 1
    %p100 = por %p98, %p99
    %p101 = scmp.ne.s32.totalorder %s90, %s91
    %p102 = scmp.eq.s32.totalorder %s14, 0
    %p103 = por %p101, %p102
    %p104 = scmp.ne.s32.totalorder %s90, %s91
    %p105 = scmp.eq.s32.totalorder %s15, 1
    %p106 = por %p104, %p105
    %p108 = scmp.ne.s32.totalorder %s91, %s107
    %p109 = scmp.eq.s32.totalorder %s15, 0
    %p110 = por %p108, %p109
    %p111 = scmp.le.s32.totalorder 1, %s9
    %p112 = scmp.lt.s32.totalorder %s9, 3
    %p113 = pnand %p111, %p112
    %p114 = pneg %p113
    // Predicated region
    $region9: #{downsample.1} parent=5 // pred_check
      _
    $region10: #{downsample.1} parent=5 // pred_check_branch
      %116 = sbr.rel (%p113) target = $region12
    $region11: #{downsample.1} parent=5 // pred_region
      %s117 = ssub.s32 %s9, 1
      // Predicated region
      $region13: #{downsample.1} parent=11 // pred_check
        %p118 = pneg %p56
      $region14: #{downsample.1} parent=11 // pred_check_branch
        %120 = sbr.rel (%p118) target = $region16
      $region15: #{downsample.1} parent=11 // pred_region
        _
      $region16: #{downsample.1} parent=11 // pred_fallthru
        _
      // Predicated region
      $region17: #{downsample.1} parent=11 // pred_check
        %p121 = pneg %p77
      $region18: #{downsample.1} parent=11 // pred_check_branch
        %123 = sbr.rel (%p121) target = $region20
      $region19: #{downsample.1} parent=11 // pred_region
        _
      $region20: #{downsample.1} parent=11 // pred_fallthru
        _
    $region12: #{downsample.1} parent=5 // pred_fallthru
      _
    %p124 = scmp.lt.s32.totalorder %s9, 2
    // Predicated region
    $region21: #{downsample.1} parent=5 // pred_check
      %p125 = pneg %p124
    $region22: #{downsample.1} parent=5 // pred_check_branch
      %127 = sbr.rel (%p125) target = $region24
    $region23: #{downsample.1} parent=5 // pred_region
      // Predicated region
      $region25: #{downsample.1} parent=23 // pred_check
        %p128 = pneg %p29
      $region26: #{downsample.1} parent=23 // pred_check_branch
        %130 = sbr.rel (%p128) target = $region28
      $region27: #{downsample.1} parent=23 // pred_region
        %p131 = scmp.lt.s32.totalorder %s9, 1
        %s132 = scalar_select %p131, %s9, 1
        %s133 = smul.addr %s132, 4
        %s134 = smul.addr %s133, 4
        %s135 = scalar_lea.vmem %s0, %s134
      $region28: #{downsample.1} parent=23 // pred_fallthru
        _
    $region24: #{downsample.1} parent=5 // pred_fallthru
      _
    %p136 = scmp.le.s32.totalorder 1, %s9
    %p137 = scmp.lt.s32.totalorder %s9, 3
    %p138 = pnand %p136, %p137
    %p139 = pneg %p138
    // Predicated region
    $region29: #{downsample.1} parent=5 // pred_check
      _
    $region30: #{downsample.1} parent=5 // pred_check_branch
      %141 = sbr.rel (%p138) target = $region32
    $region31: #{downsample.1} parent=5 // pred_region
      %s142 = ssub.s32 %s9, 1
      %p143 = scmp.lt.s32.totalorder %s14, 1
      %s144 = scalar_select %p143, %s14, 1
      %s145 = smul.addr %s144, 4
      %s146 = smul.addr %s145, 4
      %s147 = scalar_lea.vmem %s0, %s146
      %p148 = pneg %p35
      %p149 = pneg %p32
      %p150 = pneg %p56
      %p151 = pneg %p53
      %p152 = pneg %p77
      %p153 = pneg %p74
      %p154 = pneg %p103
      %p155 = pneg %p100
      %p156 = scmp.lt.s32.totalorder %s14, 1
      %s157 = scalar_select %p156, %s14, 1
      %s158 = smul.addr %s157, 8
      %s159 = scalar_lea.vmem %s3, %s158
      %p160 = scmp.lt.s32.totalorder %s14, 1
      %s161 = scalar_select %p160, %s14, 1
      %s162 = smul.addr %s161, 4
      %s163 = smul.addr %s162, 4
      %s164 = scalar_lea.vmem %s0, %s163
      %p165 = scmp.lt.s32.totalorder %s14, 1
      %s166 = scalar_select %p165, %s14, 1
      %s167 = smul.addr %s166, 8
      %s168 = scalar_lea.vmem %s3, %s167
      %v169 = vld [vmem:[%s164] sm:$0xf]
      %s170 = scalar_lea.vmem %s164, 4
      %v171 = vld [vmem:[%s170] sm:$0xf]
      %v172 = vmax.f32 %v169, %v171
      %s173 = scalar_lea.vmem %s164, 8
      %v174 = vld [vmem:[%s173] sm:$0xf]
      %s175 = scalar_lea.vmem %s164, 12
      %v176 = vld [vmem:[%s175] sm:$0xf]
      %v177 = vmax.f32 %v174, %v176
      %v178 = vmax.f32 %v172, %v177
      %vm179 = vcmask 68608
      %180 = vst.msk [vmem:[#allocation2] sm:$0xf] %vm179, 0.0
      %vm181 = vcmask 667208
      %182 = vst.msk [vmem:[#allocation2] sm:$0xf] %vm181, 0.0
      %184 = vrot.lane.b32.xlu0 %v178, 9
      %v185 = vpop.permute.xlu0 %184
      %vm187 = vcmask 592968
      %188 = vst.msk [vmem:[#allocation2] sm:$0xf] %vm187, %v185
      %v189 = vlaneseq
      %v190 = vand.u32 %v189, 127
      %vm191 = vcmp.lt.s32.totalorder %v190, 0
      %v192 = vsub.s32 0, %v190
      %v193 = vsel %vm191, %v192, %v190
      %v194 = vshrl.u32 %v193, 3
      %v195 = vand.u32 %v193, 7
      %v196 = vsub.s32 0, %v195
      %v197 = vsel %vm191, %v196, %v195
      %vm198 = vcmp.ne.s32.totalorder %v197, 0
      %vm199 = vcmp.lt.s32.totalorder %v197, 0
      %vm200 = vmand %vm199, %vm198
      %v201 = vadd.s32 %v197, 8
      %v202 = vsel %vm200, %v201, %v197
      %vm203 = vcmp.gt.s32.totalorder %v202, 0
      %v204 = vsel %vm203, 1, 0
      %v205 = vcvt.s32.f32 %v204
      %vm206 = vcmp.lt.s32.totalorder %v202, 7
      %v207 = vsel %vm206, 1, 0
      %v208 = vcvt.s32.f32 %v207
      %v209 = vld [vmem:[#allocation2] sm:$0xf]
      %v210 = vmul.f32 %v209, %v205
      %vm211 = vcmask 519168
      %212 = vst.msk [vmem:[#allocation3] sm:$0xf] %vm211, %v210
      %v213 = vld [vmem:[#allocation2] sm:$0xf]
      %215 = vrot.lane.b32.xlu0 %v213, 127
      %v216 = vpop.permute.xlu0 %215
      %218 = vst.msk [vmem:[#allocation3 + $0x4] sm:$0xf] %vm211, %v216
      %v219 = vld [vmem:[#allocation2] sm:$0xf]
      %221 = vrot.lane.b32.xlu0 %v208, 2
      %v222 = vpop.permute.xlu0 %221
      %v224 = vmul.f32 %v219, %v222
      %226 = vrot.lane.b32.xlu0 %v224, 126
      %v227 = vpop.permute.xlu0 %226
      %229 = vst.msk [vmem:[#allocation3 + $0x8] sm:$0xf] %vm211, %v227
      %v230 = vld [vmem:[#allocation2] sm:$0xf]
      %232 = vrot.lane.b32.xlu0 %v205, 8
      %v233 = vpop.permute.xlu0 %232
      %v235 = vmul.f32 %v230, %v233
      %237 = vrot.lane.b32.xlu0 %v235, 120
      %v238 = vpop.permute.xlu0 %237
      %240 = vst.msk [vmem:[#allocation3 + $0xc] sm:$0xf] %vm211, %v238
      %v241 = vld [vmem:[#allocation2] sm:$0xf]
      %243 = vrot.lane.b32.xlu0 %v241, 119
      %v244 = vpop.permute.xlu0 %243
      %246 = vst.msk [vmem:[#allocation3 + $0x10] sm:$0xf] %vm211, %v244
      %v247 = vld [vmem:[#allocation2] sm:$0xf]
      %248 = vrot.lane.b32.xlu0 %v208, 10
      %v249 = vpop.permute.xlu0 %248
      %v251 = vmul.f32 %v247, %v249
      %253 = vrot.lane.b32.xlu0 %v251, 118
      %v254 = vpop.permute.xlu0 %253
      %256 = vst.msk [vmem:[#allocation3 + $0x14] sm:$0xf] %vm211, %v254
      %v257 = vld [vmem:[#allocation2] sm:$0xf]
      %258 = vrot.lane.b32.xlu0 %v205, 16
      %v259 = vpop.permute.xlu0 %258
      %v261 = vmul.f32 %v257, %v259
      %263 = vrot.lane.b32.xlu0 %v261, 112
      %v264 = vpop.permute.xlu0 %263
      %266 = vst.msk [vmem:[#allocation3 + $0x18] sm:$0xf] %vm211, %v264
      %v267 = vld [vmem:[#allocation2] sm:$0xf]
      %269 = vrot.lane.b32.xlu0 %v267, 111
      %v270 = vpop.permute.xlu0 %269
      %272 = vst.msk [vmem:[#allocation3 + $0x1c] sm:$0xf] %vm211, %v270
      %v273 = vld [vmem:[#allocation2] sm:$0xf]
      %274 = vrot.lane.b32.xlu0 %v208, 18
      %v275 = vpop.permute.xlu0 %274
      %v277 = vmul.f32 %v273, %v275
      %279 = vrot.lane.b32.xlu0 %v277, 110
      %v280 = vpop.permute.xlu0 %279
      %282 = vst.msk [vmem:[#allocation3 + $0x20] sm:$0xf] %vm211, %v280
      %v283 = vld [vmem:[%s1] sm:$0xff]
      %v284 = vld [vmem:[#allocation3] sm:$0xff]
      %v285 = vld [vmem:[#allocation3 + $0x8] sm:$0xff]
      %v286 = vld [vmem:[#allocation3 + $0x10] sm:$0xff]
      %v287 = vld [vmem:[#allocation3 + $0x18] sm:$0xff]
      %v288 = vld [vmem:[#allocation3 + $0x20] sm:$0xf]
      %v289 = vld [vmem:[%s2] sm:$0xff]
      %291 = vset.pattern.permute.xlu0 0
      %292 = vperm.xlu0 %291, %v289
      %v293 = vpop.permute.xlu0 %292
      %vm295 = vcmask 293888
      %v297 = vsel %vm295, %v283, 0
      %vm299 = vcmask 1043456
      %v301 = vsel %vm299, %v288, 0
      %303 = vmatpush.msra.mxu0 0.0
      %304 = vmatpush.msra.mxu0 0.0
      %305 = vmatpush.msra.mxu0 0.0
      %306 = vmatpush.msra.mxu0 0.0
      %307 = vmatpush.msra.mxu0 0.0
      %308 = vmatpush.msra.mxu0 0.0
      %309 = vmatpush.msra.mxu0 0.0
      %310 = vmatpush.msra.mxu0 0.0
      %311 = vmatpush.msra.mxu0 0.0
      %312 = vmatpush.msra.mxu0 0.0
      %313 = vmatpush.msra.mxu0 0.0
      %314 = vmatpush.msra.mxu0 %v301
      %315 = vmatpush.msra.mxu0 %v287
      %316 = vmatpush.msra.mxu0 %v286
      %317 = vmatpush.msra.mxu0 %v285
      %318 = vmatpush.msra.mxu0 %v284
      %319 = vmatmul.f32.gmra.mxu0 %v297
      %v320 = vpop.f32.mrf.mxu0
      %v321 = vadd.f32 %v293, %v320
      %322 = vdwg.mxu0
      %vm323 = vcmask 523264
      %324 = vst.msk [vmem:[%s168] sm:$0xff] %vm323, %v321
      %p325 = scmp.lt.s32.totalorder %s14, 1
      %s326 = scalar_select %p325, %s14, 1
      %s327 = smul.addr %s326, 8
      %s328 = scalar_lea.vmem %s3, %s327
      // Predicated region
      $region33: #{downsample.1} parent=31 // pred_check
        %p329 = pneg %p100
      $region34: #{downsample.1} parent=31 // pred_check_branch
        %331 = sbr.rel (%p329) target = $region36
      $region35: #{downsample.1} parent=31 // pred_region
        _
      $region36: #{downsample.1} parent=31 // pred_fallthru
        _
    $region32: #{downsample.1} parent=5 // pred_fallthru
      _
    %p332 = scmp.le.s32.totalorder 2, %s9
    // Predicated region
    $region37: #{downsample.1} parent=5 // pred_check
      %p333 = pneg %p332
    $region38: #{downsample.1} parent=5 // pred_check_branch
      %335 = sbr.rel (%p333) target = $region40
    $region39: #{downsample.1} parent=5 // pred_region
      %s336 = ssub.s32 %s9, 2
      // Predicated region
      $region41: #{downsample.1} parent=39 // pred_check
        %p337 = pneg %p106
      $region42: #{downsample.1} parent=39 // pred_check_branch
        %339 = sbr.rel (%p337) target = $region44
      $region43: #{downsample.1} parent=39 // pred_region
        %p340 = scmp.lt.s32.totalorder %s15, 1
        %s341 = scalar_select %p340, %s15, 1
        %s342 = smul.addr %s341, 8
        %s343 = scalar_lea.vmem %s3, %s342
      $region44: #{downsample.1} parent=39 // pred_fallthru
        _
    $region40: #{downsample.1} parent=5 // pred_fallthru
      _
  $region6: #{downsample.1} parent=0 // loop_footer
    %s13 = sadd.s32 1, %s9
  $region7: #{downsample.1} parent=0 // loop_footer_branch
    %8 = sbr.rel target = $region3
  $region8: #{downsample.1} parent=0 // loop_exit
    _

</llo_original>
